<compile_context>
chip_gen: v6e
topology: v6e:2x2x1
jax: 0.10.0
libtpu: 0.0.40
codegen_flags: <defaults>
</compile_context>

<pallas_src>
import jax
import jax.numpy as jnp
from jax.experimental import pallas as pl
from jax.experimental.pallas import tpu as pltpu

_LANE = 128  # TPU lane width; all padded hidden widths are multiples of this.


def _leaky_relu(x, negative_slope=0.1):
    # For slope in (0, 1): max(x, slope*x) == LeakyReLU(x, slope) for finite x.
    return jnp.maximum(x, negative_slope * x)


def encoder_kernel(x_ref, w1_ref, w_stk_ref, b_ref, out_ref):
    # Layer 1: (tile_b, input_dim) @ (input_dim, 128), bf16 operands, f32 accumulate.
    h = jnp.dot(x_ref[...], w1_ref[...], preferred_element_type=jnp.float32)
    h = _leaky_relu(h + b_ref[0:1, :])
    # Layers 2..4: zero-padded (128, 128) weights stacked along axis 0.
    for l in range(3):
        h = jnp.dot(h.astype(w_stk_ref.dtype), w_stk_ref[l],
                    preferred_element_type=jnp.float32)
        h = _leaky_relu(h + b_ref[l + 1:l + 2, :])
    out_ref[...] = h.astype(out_ref.dtype)


def _pad_to(a, shape):
    pads = [(0, t - s) for s, t in zip(a.shape, shape)]
    return jnp.pad(a, pads)


def _choose_batch_tiling(batch, max_tile, align):
    """Return (tile_b, padded_batch).  Prefers a tile that divides the batch exactly."""
    if batch <= max_tile:
        # Single grid step; block equals the full batch dim, so no (8,128) issue and
        # no wrapper-side padding.
        return batch, batch
    # Largest aligned tile that divides the batch exactly -> no jnp.pad of x.
    start = max_tile - (max_tile % align)
    for t in range(start, align - 1, -align):
        if batch % t == 0:
            return t, batch
    # Fallback: pad the batch up to a multiple of max_tile (rare; batch with no
    # 16-aligned divisor <= max_tile).
    t = max_tile
    padded = ((batch + t - 1) // t) * t
    return t, padded


def encoder_basic2_forward(x, params, *, max_tile_b=256, use_bf16=True):
    """x: (batch, input_dim).  params: w1..w4 as (in, out), b1..b4 as (out,)."""
    batch, input_dim = x.shape
    w1 = params["w1"]
    hidden_dim1 = w1.shape[1]
    bottleneck_dim = params["w4"].shape[1]
    out_dtype = x.dtype

    assert input_dim % _LANE == 0, "input_dim must be a multiple of 128"
    assert hidden_dim1 == _LANE, "this kernel pads all hidden widths to 128"

    cdtype = jnp.bfloat16 if use_bf16 else jnp.float32

    # Pack layers 2..4 into one zero-padded (3, 128, 128) tensor and all biases into a
    # single f32 (4, 128) tensor -> 4 inputs / DMA descriptors total.
    w_stack = jnp.stack([
        _pad_to(params["w2"], (_LANE, _LANE)),
        _pad_to(params["w3"], (_LANE, _LANE)),
        _pad_to(params["w4"], (_LANE, _LANE)),
    ]).astype(cdtype)
    b_pack = jnp.stack([
        _pad_to(params["b1"], (_LANE,)),
        _pad_to(params["b2"], (_LANE,)),
        _pad_to(params["b3"], (_LANE,)),
        _pad_to(params["b4"], (_LANE,)),
    ]).astype(jnp.float32)

    x_c = x.astype(cdtype)
    w1_c = w1.astype(cdtype)

    align = 16 if use_bf16 else 8
    tile_b, padded_batch = _choose_batch_tiling(batch, max_tile_b, align)
    if padded_batch != batch:
        x_c = jnp.pad(x_c, ((0, padded_batch - batch), (0, 0)))

    grid = (padded_batch // tile_b,)
    kernel_out_dtype = jnp.bfloat16 if use_bf16 else jnp.float32

    out = pl.pallas_call(
        encoder_kernel,
        out_shape=jax.ShapeDtypeStruct((padded_batch, _LANE), kernel_out_dtype),
        grid_spec=pltpu.PrefetchScalarGridSpec(
            num_scalar_prefetch=0,
            grid=grid,
            in_specs=[
                # x tiles pipeline along the batch grid axis.
                pl.BlockSpec((tile_b, input_dim), lambda i: (i, 0)),
                # Weights / biases: constant index_map -> DMA'd once, resident in VMEM.
                pl.BlockSpec((input_dim, _LANE), lambda i: (0, 0)),
                pl.BlockSpec((3, _LANE, _LANE), lambda i: (0, 0, 0)),
                pl.BlockSpec((4, _LANE), lambda i: (0, 0)),
            ],
            out_specs=pl.BlockSpec((tile_b, _LANE), lambda i: (i, 0)),
        ),
        compiler_params=pltpu.CompilerParams(
            dimension_semantics=("parallel",)),
    )(x_c, w1_c, w_stack, b_pack)

    # Strip batch padding and the zero-padded output lanes; restore caller dtype.
    return out[:batch, :bottleneck_dim].astype(out_dtype)


def init_params(key, input_dim, hidden_dim1, hidden_dim2, hidden_dim3, bottleneck_dim):
    """Deterministic init mimicking nn.Linear default (uniform +-1/sqrt(fan_in))."""
    dims = [(input_dim, hidden_dim1),
            (hidden_dim1, hidden_dim2),
            (hidden_dim2, hidden_dim3),
            (hidden_dim3, bottleneck_dim)]
    params = {}
    for i, (fan_in, fan_out) in enumerate(dims, start=1):
        key, kw, kb = jax.random.split(key, 3)
        bound = 1.0 / jnp.sqrt(jnp.float32(fan_in))
        params[f"w{i}"] = jax.random.uniform(
            kw, (fan_in, fan_out), jnp.float32, minval=-bound, maxval=bound)
        params[f"b{i}"] = jax.random.uniform(
            kb, (fan_out,), jnp.float32, minval=-bound, maxval=bound)
    return params


def reference_forward(x, params, *, mixed_precision=False):
    """Pure-JAX reference. mixed_precision=True mirrors the kernel's bf16 casts."""
    cdtype = jnp.bfloat16 if mixed_precision else jnp.float32
    h = x.astype(jnp.float32)
    for i in range(1, 5):
        h = jnp.dot(h.astype(cdtype), params[f"w{i}"].astype(cdtype),
                    preferred_element_type=jnp.float32) + params[f"b{i}"]
        h = jnp.where(h >= 0, h, 0.1 * h)
    if mixed_precision:
        h = h.astype(jnp.bfloat16).astype(jnp.float32)
    return h


if __name__ == "__main__":
    # Encoder_basic2 shapes: input_dim=256 -> 128 -> 64 -> 32 -> bottleneck_dim=8.
    batch = 16
    input_dim, hidden_dim1, hidden_dim2, hidden_dim3, bottleneck_dim = 256, 128, 64, 32, 8

    key = jax.random.PRNGKey(0)
    key, kx = jax.random.split(key)
    x = jax.random.normal(kx, (batch, input_dim), dtype=jnp.float32)

    params = init_params(key, input_dim, hidden_dim1, hidden_dim2,
                         hidden_dim3, bottleneck_dim)

    out = encoder_basic2_forward(x, params)
    out = jax.block_until_ready(out)

    assert out.shape == (batch, bottleneck_dim), out.shape

    # Tight check vs. a reference that mirrors the kernel's bf16-in / f32-acc numerics.
    ref_mixed = reference_forward(x, params, mixed_precision=True)
    assert jnp.allclose(out, ref_mixed, atol=2e-2, rtol=2e-2), "mismatch vs mixed ref"

    # Looser sanity check vs. the exact f32 module semantics (bf16 rounding only).
    ref_exact = reference_forward(x, params, mixed_precision=False)
    assert jnp.allclose(out, ref_exact, atol=8e-2, rtol=8e-2), "mismatch vs f32 ref"

    print("KERNEL_OK")
</pallas_src>

<mosaic_0001>
module attributes {stable_mosaic.version = 11 : i64} {
  func.func @encoder_kernel(%arg0: i32, %arg1: memref<16x256xbf16, #tpu.memory_space<vmem>>, %arg2: memref<256x128xbf16, #tpu.memory_space<vmem>>, %arg3: memref<3x128x128xbf16, #tpu.memory_space<vmem>>, %arg4: memref<4x128xf32, #tpu.memory_space<vmem>>, %arg5: memref<16x128xbf16, #tpu.memory_space<vmem>>) attributes {dimension_semantics = [#tpu.dimension_semantics<parallel>], iteration_bounds = array<i64: 1>, scalar_prefetch = 0 : i64, scratch_operands = 0 : i64, tpu.core_type = #tpu.core_type<tc>, window_params = [{transform_indices = @transform_0, window_bounds = array<i64: 16, 256>}, {pipeline_mode = #tpu.pipeline_mode<synchronous>, transform_indices = @transform_1, window_bounds = array<i64: 256, 128>}, {pipeline_mode = #tpu.pipeline_mode<synchronous>, transform_indices = @transform_2, window_bounds = array<i64: 3, 128, 128>}, {pipeline_mode = #tpu.pipeline_mode<synchronous>, transform_indices = @transform_3, window_bounds = array<i64: 4, 128>}, {transform_indices = @transform_4, window_bounds = array<i64: 16, 128>}]} {
    %c0 = arith.constant 0 : index
    %c0_0 = arith.constant 0 : index
    %0 = vector.load %arg1[%c0, %c0_0] : memref<16x256xbf16, #tpu.memory_space<vmem>>, vector<16x256xbf16>
    %c0_1 = arith.constant 0 : index
    %c0_2 = arith.constant 0 : index
    %1 = vector.load %arg2[%c0_1, %c0_2] : memref<256x128xbf16, #tpu.memory_space<vmem>>, vector<256x128xbf16>
    %cst = arith.constant dense<0.000000e+00> : vector<16x128xf32>
    %2 = tpu.matmul %0, %1, %cst {dimension_numbers = #tpu.dot_dimension_numbers<[1], [0], [0], [1], [0, 0, 1, 1], [], []>} : vector<16x256xbf16>, vector<256x128xbf16>, vector<16x128xf32> -> vector<16x128xf32>
    %c0_3 = arith.constant 0 : index
    %c0_4 = arith.constant 0 : index
    %3 = vector.load %arg4[%c0_3, %c0_4] : memref<4x128xf32, #tpu.memory_space<vmem>>, vector<1x128xf32>
    %4 = vector.broadcast %3 : vector<1x128xf32> to vector<16x128xf32>
    %5 = arith.addf %2, %4 : vector<16x128xf32>
    %cst_5 = arith.constant 1.000000e-01 : f32
    %6 = vector.broadcast %cst_5 : f32 to vector<16x128xf32>
    %7 = arith.mulf %6, %5 : vector<16x128xf32>
    %8 = arith.maximumf %5, %7 : vector<16x128xf32>
    %9 = arith.truncf %8 : vector<16x128xf32> to vector<16x128xbf16>
    %c0_6 = arith.constant 0 : index
    %c0_7 = arith.constant 0 : index
    %c0_8 = arith.constant 0 : index
    %10 = vector.load %arg3[%c0_6, %c0_7, %c0_8] : memref<3x128x128xbf16, #tpu.memory_space<vmem>>, vector<1x128x128xbf16>
    %11 = vector.shape_cast %10 : vector<1x128x128xbf16> to vector<128x128xbf16>
    %cst_9 = arith.constant dense<0.000000e+00> : vector<16x128xf32>
    %12 = tpu.matmul %9, %11, %cst_9 {dimension_numbers = #tpu.dot_dimension_numbers<[1], [0], [0], [1], [0, 0, 1, 1], [], []>} : vector<16x128xbf16>, vector<128x128xbf16>, vector<16x128xf32> -> vector<16x128xf32>
    %c1 = arith.constant 1 : index
    %c0_10 = arith.constant 0 : index
    %13 = vector.load %arg4[%c1, %c0_10] : memref<4x128xf32, #tpu.memory_space<vmem>>, vector<1x128xf32>
    %14 = vector.broadcast %13 : vector<1x128xf32> to vector<16x128xf32>
    %15 = arith.addf %12, %14 : vector<16x128xf32>
    %cst_11 = arith.constant 1.000000e-01 : f32
    %16 = vector.broadcast %cst_11 : f32 to vector<16x128xf32>
    %17 = arith.mulf %16, %15 : vector<16x128xf32>
    %18 = arith.maximumf %15, %17 : vector<16x128xf32>
    %19 = arith.truncf %18 : vector<16x128xf32> to vector<16x128xbf16>
    %c1_12 = arith.constant 1 : index
    %c0_13 = arith.constant 0 : index
    %c0_14 = arith.constant 0 : index
    %20 = vector.load %arg3[%c1_12, %c0_13, %c0_14] : memref<3x128x128xbf16, #tpu.memory_space<vmem>>, vector<1x128x128xbf16>
    %21 = vector.shape_cast %20 : vector<1x128x128xbf16> to vector<128x128xbf16>
    %cst_15 = arith.constant dense<0.000000e+00> : vector<16x128xf32>
    %22 = tpu.matmul %19, %21, %cst_15 {dimension_numbers = #tpu.dot_dimension_numbers<[1], [0], [0], [1], [0, 0, 1, 1], [], []>} : vector<16x128xbf16>, vector<128x128xbf16>, vector<16x128xf32> -> vector<16x128xf32>
    %c2 = arith.constant 2 : index
    %c0_16 = arith.constant 0 : index
    %23 = vector.load %arg4[%c2, %c0_16] : memref<4x128xf32, #tpu.memory_space<vmem>>, vector<1x128xf32>
    %24 = vector.broadcast %23 : vector<1x128xf32> to vector<16x128xf32>
    %25 = arith.addf %22, %24 : vector<16x128xf32>
    %cst_17 = arith.constant 1.000000e-01 : f32
    %26 = vector.broadcast %cst_17 : f32 to vector<16x128xf32>
    %27 = arith.mulf %26, %25 : vector<16x128xf32>
    %28 = arith.maximumf %25, %27 : vector<16x128xf32>
    %29 = arith.truncf %28 : vector<16x128xf32> to vector<16x128xbf16>
    %c2_18 = arith.constant 2 : index
    %c0_19 = arith.constant 0 : index
    %c0_20 = arith.constant 0 : index
    %30 = vector.load %arg3[%c2_18, %c0_19, %c0_20] : memref<3x128x128xbf16, #tpu.memory_space<vmem>>, vector<1x128x128xbf16>
    %31 = vector.shape_cast %30 : vector<1x128x128xbf16> to vector<128x128xbf16>
    %cst_21 = arith.constant dense<0.000000e+00> : vector<16x128xf32>
    %32 = tpu.matmul %29, %31, %cst_21 {dimension_numbers = #tpu.dot_dimension_numbers<[1], [0], [0], [1], [0, 0, 1, 1], [], []>} : vector<16x128xbf16>, vector<128x128xbf16>, vector<16x128xf32> -> vector<16x128xf32>
    %c3 = arith.constant 3 : index
    %c0_22 = arith.constant 0 : index
    %33 = vector.load %arg4[%c3, %c0_22] : memref<4x128xf32, #tpu.memory_space<vmem>>, vector<1x128xf32>
    %34 = vector.broadcast %33 : vector<1x128xf32> to vector<16x128xf32>
    %35 = arith.addf %32, %34 : vector<16x128xf32>
    %cst_23 = arith.constant 1.000000e-01 : f32
    %36 = vector.broadcast %cst_23 : f32 to vector<16x128xf32>
    %37 = arith.mulf %36, %35 : vector<16x128xf32>
    %38 = arith.maximumf %35, %37 : vector<16x128xf32>
    %39 = arith.truncf %38 : vector<16x128xf32> to vector<16x128xbf16>
    %c0_24 = arith.constant 0 : index
    %c0_25 = arith.constant 0 : index
    %40 = vector.load %arg5[%c0_24, %c0_25] : memref<16x128xbf16, #tpu.memory_space<vmem>>, vector<16x128xbf16>
    tpu.vector_store %arg5[%c0_24, %c0_25], %39 {strides = array<i32>} : memref<16x128xbf16, #tpu.memory_space<vmem>>, vector<16x128xbf16>,
    return
  }
  func.func @transform_0(%arg0: i32) -> (i32, i32) {
    %c0_i32 = arith.constant 0 : i32
    %c0_i32_0 = arith.constant 0 : i32
    return %arg0, %c0_i32 : i32, i32
  }
  func.func @transform_1(%arg0: i32) -> (i32, i32) {
    %c0_i32 = arith.constant 0 : i32
    %c0_i32_0 = arith.constant 0 : i32
    %c0_i32_1 = arith.constant 0 : i32
    return %c0_i32, %c0_i32_0 : i32, i32
  }
  func.func @transform_2(%arg0: i32) -> (i32, i32, i32) {
    %c0_i32 = arith.constant 0 : i32
    %c0_i32_0 = arith.constant 0 : i32
    %c0_i32_1 = arith.constant 0 : i32
    %c0_i32_2 = arith.constant 0 : i32
    return %c0_i32, %c0_i32_0, %c0_i32_1 : i32, i32, i32
  }
  func.func @transform_3(%arg0: i32) -> (i32, i32) {
    %c0_i32 = arith.constant 0 : i32
    %c0_i32_0 = arith.constant 0 : i32
    %c0_i32_1 = arith.constant 0 : i32
    return %c0_i32, %c0_i32_0 : i32, i32
  }
  func.func @transform_4(%arg0: i32) -> (i32, i32) {
    %c0_i32 = arith.constant 0 : i32
    %c0_i32_0 = arith.constant 0 : i32
    return %arg0, %c0_i32 : i32, i32
  }
}

</mosaic_0001>

<llo_original>
// kernel: tpu_custom_call.1
$region0: #{tpu_custom_call.1}
  #allocation0 [shape = 'u32[]', space=smem, size = 0x4, offset = 0x4, fixed_abs, tag = 'smem constant byte address 0x4 - core index']
  #allocation1 [shape = 'u32[144,128]{1,0:T(1,128)}', space=vmem, size = 0x12000, scoped, tag = 'internal scratch']
  %s0 = inlined_call_operand.hbm [shape: bf16[16,256], index: 0, kind: input, shape index: {}]
  %s1 = inlined_call_operand.hbm [shape: bf16[256,128], index: 1, kind: input, shape index: {}]
  %s2 = inlined_call_operand.hbm [shape: bf16[3,128,128], index: 2, kind: input, shape index: {}]
  %s3 = inlined_call_operand.vmem [shape: f32[4,128], index: 3, kind: input, shape index: {}]
  %s4 = inlined_call_operand.hbm [shape: bf16[16,128], index: 4, kind: output, shape index: {}]
  %s5 = sld [smem:[#allocation0]]
  $region38: #{tpu_custom_call.1} parent=0
    _
  %s7 = ssub.s32 1, %s5
  %s8 = scalar_select 0, %s7, %s5
  $region1: #{tpu_custom_call.1} parent=0
    #allocation2 [shape = 'u8[8192]{0}', space=vmem, size = 0x2000, scoped, tag = 'input window, operand 0, single buffered']
    #allocation3 [shape = 's32[1]{0}', space=sflag, size = 0x4, scoped, tag = 'scoped memory for tpu_custom_call.1']
    #allocation4 [shape = 's32[1]{0}', space=sflag, size = 0x4, scoped, tag = 'scoped memory for tpu_custom_call.1']
    #allocation5 [shape = 'u8[65536]{0}', space=vmem, size = 0x10000, scoped, tag = 'input window, operand 1, single buffered']
    #allocation6 [shape = 's32[1]{0}', space=sflag, size = 0x4, scoped, tag = 'scoped memory for tpu_custom_call.1']
    #allocation7 [shape = 'u8[98304]{0}', space=vmem, size = 0x18000, scoped, tag = 'input window, operand 2, single buffered']
    #allocation8 [shape = 'u8[4096]{0}', space=vmem, size = 0x1000, scoped, tag = 'output window, operand 0, single buffered']
    %9 = vsyncpa [#allocation3], 0
    %10 = vsyncpa [#allocation6], 0
    %11 = vsyncpa [#allocation4], 0
    // Predicated region
    $region2: #{tpu_custom_call.1} parent=1 // pred_check
      _
    $region3: #{tpu_custom_call.1} parent=1 // pred_check_branch
      %13 = sbr.rel (0) target = $region5
    $region4: #{tpu_custom_call.1} parent=1 // pred_region
      %s15 = ssub.s32 256, 256
      %16 = vsyncadd [#allocation3], %s15
      %s17 = sshll.u32 [#allocation2], 4
      %s18 = int_to_ptr.vmem [resolvable:$true] %s17
      %23 = dma.hbm_to_vmem [thread:$0]  %s0, 256, %s18, [#allocation3], 128, 128, 8
    $region5: #{tpu_custom_call.1} parent=1 // pred_fallthru
      _
    // Predicated region
    $region6: #{tpu_custom_call.1} parent=1 // pred_check
      _
    $region7: #{tpu_custom_call.1} parent=1 // pred_check_branch
      %25 = sbr.rel (0) target = $region9
    $region8: #{tpu_custom_call.1} parent=1 // pred_region
      %s27 = ssub.s32 2048, 2048
      %28 = vsyncadd [#allocation6], %s27
      %s29 = sshll.u32 [#allocation5], 4
      %s30 = int_to_ptr.vmem [resolvable:$true] %s29
      %35 = dma.hbm_to_vmem [thread:$0]  %s1, 2048, %s30, [#allocation6], 64, 64, 4
    $region9: #{tpu_custom_call.1} parent=1 // pred_fallthru
      _
    // Predicated region
    $region10: #{tpu_custom_call.1} parent=1 // pred_check
      _
    $region11: #{tpu_custom_call.1} parent=1 // pred_check_branch
      %37 = sbr.rel (0) target = $region13
    $region12: #{tpu_custom_call.1} parent=1 // pred_region
      %s39 = ssub.s32 3072, 3072
      %40 = vsyncadd [#allocation6], %s39
      %s41 = sshll.u32 [#allocation7], 4
      %s42 = int_to_ptr.vmem [resolvable:$true] %s41
      %47 = dma.hbm_to_vmem [thread:$0]  %s2, 3072, %s42, [#allocation6], 64, 64, 4
    $region13: #{tpu_custom_call.1} parent=1 // pred_fallthru
      _
    // Predicated region
    $region14: #{tpu_custom_call.1} parent=1 // pred_check
      _
    $region15: #{tpu_custom_call.1} parent=1 // pred_check_branch
      %49 = sbr.rel (0) target = $region17
    $region16: #{tpu_custom_call.1} parent=1 // pred_region
      _
    $region17: #{tpu_custom_call.1} parent=1 // pred_fallthru
      _
    // Predicated region
    $region18: #{tpu_custom_call.1} parent=1 // pred_check
      _
    $region19: #{tpu_custom_call.1} parent=1 // pred_check_branch
      %51 = sbr.rel (0) target = $region21
    $region20: #{tpu_custom_call.1} parent=1 // pred_region
      %52 = dma.done [#allocation3], 256
    $region21: #{tpu_custom_call.1} parent=1 // pred_fallthru
      _
    // Predicated region
    $region22: #{tpu_custom_call.1} parent=1 // pred_check
      _
    $region23: #{tpu_custom_call.1} parent=1 // pred_check_branch
      %54 = sbr.rel (0) target = $region25
    $region24: #{tpu_custom_call.1} parent=1 // pred_region
      %55 = dma.done [#allocation6], 2048
    $region25: #{tpu_custom_call.1} parent=1 // pred_fallthru
      _
    // Predicated region
    $region26: #{tpu_custom_call.1} parent=1 // pred_check
      _
    $region27: #{tpu_custom_call.1} parent=1 // pred_check_branch
      %57 = sbr.rel (0) target = $region29
    $region28: #{tpu_custom_call.1} parent=1 // pred_region
      %58 = dma.done [#allocation6], 3072
    $region29: #{tpu_custom_call.1} parent=1 // pred_fallthru
      _
    %v60 = vld [vmem:[#allocation2] sm:$0xff]
    %v61 = vld [vmem:[#allocation2 + $0x8] sm:$0xff]
    %v62 = vld [vmem:[#allocation5] sm:$0xf]
    %v63 = vld [vmem:[#allocation5 + $0x4] sm:$0xf]
    %v64 = vld [vmem:[#allocation5 + $0x8] sm:$0xf]
    %v65 = vld [vmem:[#allocation5 + $0xc] sm:$0xf]
    %v66 = vld [vmem:[#allocation5 + $0x10] sm:$0xf]
    %v67 = vld [vmem:[#allocation5 + $0x14] sm:$0xf]
    %v68 = vld [vmem:[#allocation5 + $0x18] sm:$0xf]
    %v69 = vld [vmem:[#allocation5 + $0x1c] sm:$0xf]
    %v70 = vld [vmem:[#allocation5 + $0x20] sm:$0xf]
    %v71 = vld [vmem:[#allocation5 + $0x24] sm:$0xf]
    %v72 = vld [vmem:[#allocation5 + $0x28] sm:$0xf]
    %v73 = vld [vmem:[#allocation5 + $0x2c] sm:$0xf]
    %v74 = vld [vmem:[#allocation5 + $0x30] sm:$0xf]
    %v75 = vld [vmem:[#allocation5 + $0x34] sm:$0xf]
    %v76 = vld [vmem:[#allocation5 + $0x38] sm:$0xf]
    %v77 = vld [vmem:[#allocation5 + $0x3c] sm:$0xf]
    %v78 = vld [vmem:[#allocation5 + $0x40] sm:$0xf]
    %v79 = vld [vmem:[#allocation5 + $0x44] sm:$0xf]
    %v80 = vld [vmem:[#allocation5 + $0x48] sm:$0xf]
    %v81 = vld [vmem:[#allocation5 + $0x4c] sm:$0xf]
    %v82 = vld [vmem:[#allocation5 + $0x50] sm:$0xf]
    %v83 = vld [vmem:[#allocation5 + $0x54] sm:$0xf]
    %v84 = vld [vmem:[#allocation5 + $0x58] sm:$0xf]
    %v85 = vld [vmem:[#allocation5 + $0x5c] sm:$0xf]
    %v86 = vld [vmem:[#allocation5 + $0x60] sm:$0xf]
    %v87 = vld [vmem:[#allocation5 + $0x64] sm:$0xf]
    %v88 = vld [vmem:[#allocation5 + $0x68] sm:$0xf]
    %v89 = vld [vmem:[#allocation5 + $0x6c] sm:$0xf]
    %v90 = vld [vmem:[#allocation5 + $0x70] sm:$0xf]
    %v91 = vld [vmem:[#allocation5 + $0x74] sm:$0xf]
    %v92 = vld [vmem:[#allocation5 + $0x78] sm:$0xf]
    %v93 = vld [vmem:[#allocation5 + $0x7c] sm:$0xf]
    %v94 = vld [vmem:[%s3] sm:$0x1]
    %v95 = vlaneseq
    %v96 = vshrl.u32 %v95, 7
    %v97 = vsub.s32 0, %v96
    %v98 = vrot.slane %v94, %v97
    %v101 = vunpack.c.l.b16 %v60
    %v102 = vunpack.c.h.b16 %v60
    %v103 = vunpack.c.l.b16 %v61
    %v104 = vunpack.c.h.b16 %v61
    %v105 = vpack.c.b16 %v103, %v101
    %v106 = vpack.c.b16 %v104, %v102
    %v141 = vunpack.c.l.b16 %v62
    %v142 = vunpack.c.l.b16 %v63
    %v143 = vunpack.c.l.b16 %v64
    %v144 = vunpack.c.l.b16 %v65
    %v145 = vunpack.c.l.b16 %v66
    %v146 = vunpack.c.l.b16 %v67
    %v147 = vunpack.c.l.b16 %v68
    %v148 = vunpack.c.l.b16 %v69
    %v149 = vunpack.c.l.b16 %v70
    %v150 = vunpack.c.l.b16 %v71
    %v151 = vunpack.c.l.b16 %v72
    %v152 = vunpack.c.l.b16 %v73
    %v153 = vunpack.c.l.b16 %v74
    %v154 = vunpack.c.l.b16 %v75
    %v155 = vunpack.c.l.b16 %v76
    %v156 = vunpack.c.l.b16 %v77
    %v157 = vunpack.c.l.b16 %v78
    %v158 = vunpack.c.l.b16 %v79
    %v159 = vunpack.c.l.b16 %v80
    %v160 = vunpack.c.l.b16 %v81
    %v161 = vunpack.c.l.b16 %v82
    %v162 = vunpack.c.l.b16 %v83
    %v163 = vunpack.c.l.b16 %v84
    %v164 = vunpack.c.l.b16 %v85
    %v165 = vunpack.c.l.b16 %v86
    %v166 = vunpack.c.l.b16 %v87
    %v167 = vunpack.c.l.b16 %v88
    %v168 = vunpack.c.l.b16 %v89
    %v169 = vunpack.c.l.b16 %v90
    %v170 = vunpack.c.l.b16 %v91
    %v171 = vunpack.c.l.b16 %v92
    %v172 = vunpack.c.l.b16 %v93
    %v173 = vpack.c.b16 %v142, %v141
    %v174 = vpack.c.b16 %v144, %v143
    %v175 = vpack.c.b16 %v146, %v145
    %v176 = vpack.c.b16 %v148, %v147
    %v177 = vpack.c.b16 %v150, %v149
    %v178 = vpack.c.b16 %v152, %v151
    %v179 = vpack.c.b16 %v154, %v153
    %v180 = vpack.c.b16 %v156, %v155
    %v181 = vpack.c.b16 %v158, %v157
    %v182 = vpack.c.b16 %v160, %v159
    %v183 = vpack.c.b16 %v162, %v161
    %v184 = vpack.c.b16 %v164, %v163
    %v185 = vpack.c.b16 %v166, %v165
    %v186 = vpack.c.b16 %v168, %v167
    %v187 = vpack.c.b16 %v170, %v169
    %v188 = vpack.c.b16 %v172, %v171
    %205 = vmatprep.subr.bf16.mxu0 0
    %206 = vmatpush1.bf16.msra.mxu0 %v180
    %207 = vmatprep.subr.bf16.mxu0 0
    %208 = vmatpush1.bf16.msra.mxu0 %v179
    %209 = vmatprep.subr.bf16.mxu0 0
    %210 = vmatpush1.bf16.msra.mxu0 %v178
    %211 = vmatprep.subr.bf16.mxu0 0
    %212 = vmatpush1.bf16.msra.mxu0 %v177
    %213 = vmatprep.subr.bf16.mxu0 0
    %214 = vmatpush1.bf16.msra.mxu0 %v176
    %215 = vmatprep.subr.bf16.mxu0 0
    %216 = vmatpush1.bf16.msra.mxu0 %v175
    %217 = vmatprep.subr.bf16.mxu0 0
    %218 = vmatpush1.bf16.msra.mxu0 %v174
    %219 = vmatprep.subr.bf16.mxu0 0
    %220 = vmatpush1.bf16.msra.mxu0 %v173
    %221 = vmatprep.subr.bf16.mxu0 0
    %222 = vmatpush2.bf16.msra.mxu0 %v188
    %223 = vmatprep.subr.bf16.mxu0 0
    %224 = vmatpush2.bf16.msra.mxu0 %v187
    %225 = vmatprep.subr.bf16.mxu0 0
    %226 = vmatpush2.bf16.msra.mxu0 %v186
    %227 = vmatprep.subr.bf16.mxu0 0
    %228 = vmatpush2.bf16.msra.mxu0 %v185
    %229 = vmatprep.subr.bf16.mxu0 0
    %230 = vmatpush2.bf16.msra.mxu0 %v184
    %231 = vmatprep.subr.bf16.mxu0 0
    %232 = vmatpush2.bf16.msra.mxu0 %v183
    %233 = vmatprep.subr.bf16.mxu0 0
    %234 = vmatpush2.bf16.msra.mxu0 %v182
    %235 = vmatprep.subr.bf16.mxu0 0
    %236 = vmatpush2.bf16.msra.mxu0 %v181
    %237 = vmatprep.mubr.bf16.mxu0 %v106
    %238 = vmatmul.mubr.bf16.gmra.mxu0 %v105
    %v239 = vpop.f32.mrf.mxu0
    %v240 = vadd.f32 %v98, %v239
    %v241 = vpop.f32.mrf.mxu0
    %v242 = vpop.f32.mrf.mxu0
    %v243 = vadd.f32 %v98, %v242
    %v244 = vpop.f32.mrf.mxu0
    %245 = vdwg.mxu0
    %v246 = vmul.f32 %v240, 0.1
    %v247 = vmul.f32 %v243, 0.1
    %v248 = vmax.f32 %v240, %v246
    %v249 = vmax.f32 %v243, %v247
    %v250 = vpack.c.bf16 %v249, %v248
    %v251 = vld [vmem:[#allocation7] sm:$0xf]
    %v252 = vld [vmem:[#allocation7 + $0x4] sm:$0xf]
    %v253 = vld [vmem:[#allocation7 + $0x8] sm:$0xf]
    %v254 = vld [vmem:[#allocation7 + $0xc] sm:$0xf]
    %v255 = vld [vmem:[#allocation7 + $0x10] sm:$0xf]
    %v256 = vld [vmem:[#allocation7 + $0x14] sm:$0xf]
    %v257 = vld [vmem:[#allocation7 + $0x18] sm:$0xf]
    %v258 = vld [vmem:[#allocation7 + $0x1c] sm:$0xf]
    %v259 = vld [vmem:[#allocation7 + $0x20] sm:$0xf]
    %v260 = vld [vmem:[#allocation7 + $0x24] sm:$0xf]
    %v261 = vld [vmem:[#allocation7 + $0x28] sm:$0xf]
    %v262 = vld [vmem:[#allocation7 + $0x2c] sm:$0xf]
    %v263 = vld [vmem:[#allocation7 + $0x30] sm:$0xf]
    %v264 = vld [vmem:[#allocation7 + $0x34] sm:$0xf]
    %v265 = vld [vmem:[#allocation7 + $0x38] sm:$0xf]
    %v266 = vld [vmem:[#allocation7 + $0x3c] sm:$0xf]
    %v267 = vld [vmem:[%s3 + $0x1] sm:$0x1]
    %v268 = vlaneseq
    %v269 = vshrl.u32 %v268, 7
    %v270 = vsub.s32 0, %v269
    %v271 = vrot.slane %v267, %v270
    %v288 = vunpack.c.l.b16 %v251
    %v289 = vunpack.c.l.b16 %v252
    %v290 = vunpack.c.l.b16 %v253
    %v291 = vunpack.c.l.b16 %v254
    %v292 = vunpack.c.l.b16 %v255
    %v293 = vunpack.c.l.b16 %v256
    %v294 = vunpack.c.l.b16 %v257
    %v295 = vunpack.c.l.b16 %v258
    %v296 = vunpack.c.l.b16 %v259
    %v297 = vunpack.c.l.b16 %v260
    %v298 = vunpack.c.l.b16 %v261
    %v299 = vunpack.c.l.b16 %v262
    %v300 = vunpack.c.l.b16 %v263
    %v301 = vunpack.c.l.b16 %v264
    %v302 = vunpack.c.l.b16 %v265
    %v303 = vunpack.c.l.b16 %v266
    %v304 = vpack.c.b16 %v289, %v288
    %v305 = vpack.c.b16 %v291, %v290
    %v306 = vpack.c.b16 %v293, %v292
    %v307 = vpack.c.b16 %v295, %v294
    %v308 = vpack.c.b16 %v297, %v296
    %v309 = vpack.c.b16 %v299, %v298
    %v310 = vpack.c.b16 %v301, %v300
    %v311 = vpack.c.b16 %v303, %v302
    %320 = vmatprep.subr.bf16.mxu0 0
    %321 = vmatpush1.bf16.msra.mxu0 %v311
    %322 = vmatprep.subr.bf16.mxu0 0
    %323 = vmatpush1.bf16.msra.mxu0 %v310
    %324 = vmatprep.subr.bf16.mxu0 0
    %325 = vmatpush1.bf16.msra.mxu0 %v309
    %326 = vmatprep.subr.bf16.mxu0 0
    %327 = vmatpush1.bf16.msra.mxu0 %v308
    %328 = vmatprep.subr.bf16.mxu0 0
    %329 = vmatpush1.bf16.msra.mxu0 %v307
    %330 = vmatprep.subr.bf16.mxu0 0
    %331 = vmatpush1.bf16.msra.mxu0 %v306
    %332 = vmatprep.subr.bf16.mxu0 0
    %333 = vmatpush1.bf16.msra.mxu0 %v305
    %334 = vmatprep.subr.bf16.mxu0 0
    %335 = vmatpush1.bf16.msra.mxu0 %v304
    %336 = vmatprep.subr.bf16.mxu0 0
    %337 = vmatpush2.bf16.msra.mxu0 0
    %338 = vmatprep.subr.bf16.mxu0 0
    %339 = vmatpush2.bf16.msra.mxu0 0
    %340 = vmatprep.subr.bf16.mxu0 0
    %341 = vmatpush2.bf16.msra.mxu0 0
    %342 = vmatprep.subr.bf16.mxu0 0
    %343 = vmatpush2.bf16.msra.mxu0 0
    %344 = vmatprep.subr.bf16.mxu0 0
    %345 = vmatpush2.bf16.msra.mxu0 0
    %346 = vmatprep.subr.bf16.mxu0 0
    %347 = vmatpush2.bf16.msra.mxu0 0
    %348 = vmatprep.subr.bf16.mxu0 0
    %349 = vmatpush2.bf16.msra.mxu0 0
    %350 = vmatprep.subr.bf16.mxu0 0
    %351 = vmatpush2.bf16.msra.mxu0 0
    %352 = vmatprep.mubr.bf16.mxu0 0
    %353 = vmatmul.mubr.bf16.gmra.mxu0 %v250
    %v354 = vpop.f32.mrf.mxu0
    %v355 = vadd.f32 %v271, %v354
    %v356 = vpop.f32.mrf.mxu0
    %v357 = vpop.f32.mrf.mxu0
    %v358 = vadd.f32 %v271, %v357
    %v359 = vpop.f32.mrf.mxu0
    %360 = vdwg.mxu0
    %v361 = vmul.f32 %v355, 0.1
    %v362 = vmul.f32 %v358, 0.1
    %v363 = vmax.f32 %v355, %v361
    %v364 = vmax.f32 %v358, %v362
    %v365 = vpack.c.bf16 %v364, %v363
    %s366 = scalar_lea.vmem [#allocation7], 64
    %v367 = vld [vmem:[%s366] sm:$0xf]
    %v368 = vld [vmem:[%s366 + $0x4] sm:$0xf]
    %v369 = vld [vmem:[%s366 + $0x8] sm:$0xf]
    %v370 = vld [vmem:[%s366 + $0xc] sm:$0xf]
    %v371 = vld [vmem:[%s366 + $0x10] sm:$0xf]
    %v372 = vld [vmem:[%s366 + $0x14] sm:$0xf]
    %v373 = vld [vmem:[%s366 + $0x18] sm:$0xf]
    %v374 = vld [vmem:[%s366 + $0x1c] sm:$0xf]
    %v375 = vld [vmem:[%s366 + $0x20] sm:$0xf]
    %v376 = vld [vmem:[%s366 + $0x24] sm:$0xf]
    %v377 = vld [vmem:[%s366 + $0x28] sm:$0xf]
    %v378 = vld [vmem:[%s366 + $0x2c] sm:$0xf]
    %v379 = vld [vmem:[%s366 + $0x30] sm:$0xf]
    %v380 = vld [vmem:[%s366 + $0x34] sm:$0xf]
    %v381 = vld [vmem:[%s366 + $0x38] sm:$0xf]
    %v382 = vld [vmem:[%s366 + $0x3c] sm:$0xf]
    %v383 = vld [vmem:[%s3 + $0x2] sm:$0x1]
    %v384 = vlaneseq
    %v385 = vshrl.u32 %v384, 7
    %v386 = vsub.s32 0, %v385
    %v387 = vrot.slane %v383, %v386
    %v404 = vunpack.c.l.b16 %v367
    %v405 = vunpack.c.l.b16 %v368
    %v406 = vunpack.c.l.b16 %v369
    %v407 = vunpack.c.l.b16 %v370
    %v408 = vunpack.c.l.b16 %v371
    %v409 = vunpack.c.l.b16 %v372
    %v410 = vunpack.c.l.b16 %v373
    %v411 = vunpack.c.l.b16 %v374
    %v412 = vunpack.c.l.b16 %v375
    %v413 = vunpack.c.l.b16 %v376
    %v414 = vunpack.c.l.b16 %v377
    %v415 = vunpack.c.l.b16 %v378
    %v416 = vunpack.c.l.b16 %v379
    %v417 = vunpack.c.l.b16 %v380
    %v418 = vunpack.c.l.b16 %v381
    %v419 = vunpack.c.l.b16 %v382
    %v420 = vpack.c.b16 %v405, %v404
    %v421 = vpack.c.b16 %v407, %v406
    %v422 = vpack.c.b16 %v409, %v408
    %v423 = vpack.c.b16 %v411, %v410
    %v424 = vpack.c.b16 %v413, %v412
    %v425 = vpack.c.b16 %v415, %v414
    %v426 = vpack.c.b16 %v417, %v416
    %v427 = vpack.c.b16 %v419, %v418
    %436 = vmatprep.subr.bf16.mxu0 0
    %437 = vmatpush1.bf16.msra.mxu0 %v427
    %438 = vmatprep.subr.bf16.mxu0 0
    %439 = vmatpush1.bf16.msra.mxu0 %v426
    %440 = vmatprep.subr.bf16.mxu0 0
    %441 = vmatpush1.bf16.msra.mxu0 %v425
    %442 = vmatprep.subr.bf16.mxu0 0
    %443 = vmatpush1.bf16.msra.mxu0 %v424
    %444 = vmatprep.subr.bf16.mxu0 0
    %445 = vmatpush1.bf16.msra.mxu0 %v423
    %446 = vmatprep.subr.bf16.mxu0 0
    %447 = vmatpush1.bf16.msra.mxu0 %v422
    %448 = vmatprep.subr.bf16.mxu0 0
    %449 = vmatpush1.bf16.msra.mxu0 %v421
    %450 = vmatprep.subr.bf16.mxu0 0
    %451 = vmatpush1.bf16.msra.mxu0 %v420
    %452 = vmatprep.subr.bf16.mxu0 0
    %453 = vmatpush2.bf16.msra.mxu0 0
    %454 = vmatprep.subr.bf16.mxu0 0
    %455 = vmatpush2.bf16.msra.mxu0 0
    %456 = vmatprep.subr.bf16.mxu0 0
    %457 = vmatpush2.bf16.msra.mxu0 0
    %458 = vmatprep.subr.bf16.mxu0 0
    %459 = vmatpush2.bf16.msra.mxu0 0
    %460 = vmatprep.subr.bf16.mxu0 0
    %461 = vmatpush2.bf16.msra.mxu0 0
    %462 = vmatprep.subr.bf16.mxu0 0
    %463 = vmatpush2.bf16.msra.mxu0 0
    %464 = vmatprep.subr.bf16.mxu0 0
    %465 = vmatpush2.bf16.msra.mxu0 0
    %466 = vmatprep.subr.bf16.mxu0 0
    %467 = vmatpush2.bf16.msra.mxu0 0
    %468 = vmatprep.mubr.bf16.mxu0 0
    %469 = vmatmul.mubr.bf16.gmra.mxu0 %v365
    %v470 = vpop.f32.mrf.mxu0
    %v471 = vadd.f32 %v387, %v470
    %v472 = vpop.f32.mrf.mxu0
    %v473 = vpop.f32.mrf.mxu0
    %v474 = vadd.f32 %v387, %v473
    %v475 = vpop.f32.mrf.mxu0
    %476 = vdwg.mxu0
    %v477 = vmul.f32 %v471, 0.1
    %v478 = vmul.f32 %v474, 0.1
    %v479 = vmax.f32 %v471, %v477
    %v480 = vmax.f32 %v474, %v478
    %v481 = vpack.c.bf16 %v480, %v479
    %s482 = scalar_lea.vmem [#allocation7], 128
    %v483 = vld [vmem:[%s482] sm:$0xf]
    %v484 = vld [vmem:[%s482 + $0x4] sm:$0xf]
    %v485 = vld [vmem:[%s482 + $0x8] sm:$0xf]
    %v486 = vld [vmem:[%s482 + $0xc] sm:$0xf]
    %v487 = vld [vmem:[%s482 + $0x10] sm:$0xf]
    %v488 = vld [vmem:[%s482 + $0x14] sm:$0xf]
    %v489 = vld [vmem:[%s482 + $0x18] sm:$0xf]
    %v490 = vld [vmem:[%s482 + $0x1c] sm:$0xf]
    %v491 = vld [vmem:[%s482 + $0x20] sm:$0xf]
    %v492 = vld [vmem:[%s482 + $0x24] sm:$0xf]
    %v493 = vld [vmem:[%s482 + $0x28] sm:$0xf]
    %v494 = vld [vmem:[%s482 + $0x2c] sm:$0xf]
    %v495 = vld [vmem:[%s482 + $0x30] sm:$0xf]
    %v496 = vld [vmem:[%s482 + $0x34] sm:$0xf]
    %v497 = vld [vmem:[%s482 + $0x38] sm:$0xf]
    %v498 = vld [vmem:[%s482 + $0x3c] sm:$0xf]
    %v499 = vld [vmem:[%s3 + $0x3] sm:$0x1]
    %v500 = vlaneseq
    %v501 = vshrl.u32 %v500, 7
    %v502 = vsub.s32 0, %v501
    %v503 = vrot.slane %v499, %v502
    %v520 = vunpack.c.l.b16 %v483
    %v521 = vunpack.c.l.b16 %v484
    %v522 = vunpack.c.l.b16 %v485
    %v523 = vunpack.c.l.b16 %v486
    %v524 = vunpack.c.l.b16 %v487
    %v525 = vunpack.c.l.b16 %v488
    %v526 = vunpack.c.l.b16 %v489
    %v527 = vunpack.c.l.b16 %v490
    %v528 = vunpack.c.l.b16 %v491
    %v529 = vunpack.c.l.b16 %v492
    %v530 = vunpack.c.l.b16 %v493
    %v531 = vunpack.c.l.b16 %v494
    %v532 = vunpack.c.l.b16 %v495
    %v533 = vunpack.c.l.b16 %v496
    %v534 = vunpack.c.l.b16 %v497
    %v535 = vunpack.c.l.b16 %v498
    %v536 = vpack.c.b16 %v521, %v520
    %v537 = vpack.c.b16 %v523, %v522
    %v538 = vpack.c.b16 %v525, %v524
    %v539 = vpack.c.b16 %v527, %v526
    %v540 = vpack.c.b16 %v529, %v528
    %v541 = vpack.c.b16 %v531, %v530
    %v542 = vpack.c.b16 %v533, %v532
    %v543 = vpack.c.b16 %v535, %v534
    %552 = vmatprep.subr.bf16.mxu0 0
    %553 = vmatpush1.bf16.msra.mxu0 %v543
    %554 = vmatprep.subr.bf16.mxu0 0
    %555 = vmatpush1.bf16.msra.mxu0 %v542
    %556 = vmatprep.subr.bf16.mxu0 0
    %557 = vmatpush1.bf16.msra.mxu0 %v541
    %558 = vmatprep.subr.bf16.mxu0 0
    %559 = vmatpush1.bf16.msra.mxu0 %v540
    %560 = vmatprep.subr.bf16.mxu0 0
    %561 = vmatpush1.bf16.msra.mxu0 %v539
    %562 = vmatprep.subr.bf16.mxu0 0
    %563 = vmatpush1.bf16.msra.mxu0 %v538
    %564 = vmatprep.subr.bf16.mxu0 0
    %565 = vmatpush1.bf16.msra.mxu0 %v537
    %566 = vmatprep.subr.bf16.mxu0 0
    %567 = vmatpush1.bf16.msra.mxu0 %v536
    %568 = vmatprep.subr.bf16.mxu0 0
    %569 = vmatpush2.bf16.msra.mxu0 0
    %570 = vmatprep.subr.bf16.mxu0 0
    %571 = vmatpush2.bf16.msra.mxu0 0
    %572 = vmatprep.subr.bf16.mxu0 0
    %573 = vmatpush2.bf16.msra.mxu0 0
    %574 = vmatprep.subr.bf16.mxu0 0
    %575 = vmatpush2.bf16.msra.mxu0 0
    %576 = vmatprep.subr.bf16.mxu0 0
    %577 = vmatpush2.bf16.msra.mxu0 0
    %578 = vmatprep.subr.bf16.mxu0 0
    %579 = vmatpush2.bf16.msra.mxu0 0
    %580 = vmatprep.subr.bf16.mxu0 0
    %581 = vmatpush2.bf16.msra.mxu0 0
    %582 = vmatprep.subr.bf16.mxu0 0
    %583 = vmatpush2.bf16.msra.mxu0 0
    %584 = vmatprep.mubr.bf16.mxu0 0
    %585 = vmatmul.mubr.bf16.gmra.mxu0 %v481
    %v586 = vpop.f32.mrf.mxu0
    %v587 = vadd.f32 %v503, %v586
    %v588 = vpop.f32.mrf.mxu0
    %v589 = vpop.f32.mrf.mxu0
    %v590 = vadd.f32 %v503, %v589
    %v591 = vpop.f32.mrf.mxu0
    %592 = vdwg.mxu0
    %v593 = vmul.f32 %v587, 0.1
    %v594 = vmul.f32 %v590, 0.1
    %v595 = vmax.f32 %v587, %v593
    %v596 = vmax.f32 %v590, %v594
    %v597 = vpack.c.bf16 %v596, %v595
    %v599 = vunpack.c.l.b16 %v597
    %v600 = vunpack.c.h.b16 %v597
    %v601 = vpack.c.b16 %v599, %v599
    %v602 = vpack.c.b16 %v600, %v600
    %605 = vst [vmem:[#allocation8] sm:$0xf] %v601
    %606 = vst [vmem:[#allocation8 + $0x4] sm:$0xf] %v602
    // Predicated region
    $region30: #{tpu_custom_call.1} parent=1 // pred_check
      _
    $region31: #{tpu_custom_call.1} parent=1 // pred_check_branch
      %608 = sbr.rel (0) target = $region33
    $region32: #{tpu_custom_call.1} parent=1 // pred_region
      %s610 = ssub.s32 128, 128
      %611 = vsyncadd [#allocation4], %s610
      %s612 = sshll.u32 [#allocation8], 4
      %s613 = int_to_ptr.vmem [resolvable:$true] %s612
      %618 = dma.vmem_to_hbm [thread:$0]  %s613, 128, %s4, [#allocation4], 64, 64, 4
    $region33: #{tpu_custom_call.1} parent=1 // pred_fallthru
      _
    // Predicated region
    $region34: #{tpu_custom_call.1} parent=1 // pred_check
      _
    $region35: #{tpu_custom_call.1} parent=1 // pred_check_branch
      %620 = sbr.rel (0) target = $region37
    $region36: #{tpu_custom_call.1} parent=1 // pred_region
      %621 = dma.done [#allocation4], 128
    $region37: #{tpu_custom_call.1} parent=1 // pred_fallthru
      _
    %622 = vsyncpa [#allocation3], 1
    %623 = vsyncpa [#allocation6], 1
    %624 = vsyncpa [#allocation4], 1

</llo_original>
